<compile_context>
chip_gen: v6e
topology: v6e:2x2x1
jax: 0.10.0
libtpu: 0.0.40
codegen_flags: <defaults>
</compile_context>

<pallas_src>
import jax
import jax.numpy as jnp
from jax.experimental import pallas as pl
from jax.experimental.pallas import tpu as pltpu

_NUM_INTRINSICS = 5
_TILE_CAP = 8192  # rows per output block (multiple of 8); 8192*5*4 B = 160 KiB


def _broadcast_row_kernel(row_ref, out_ref):
    # row_ref: (1, 5)  float32 -- [fx, fy, cx, cy, alpha]
    # out_ref: (tile_b, 5) float32
    out_ref[...] = jnp.broadcast_to(row_ref[...], out_ref.shape)


def _round_up(x, m):
    return ((x + m - 1) // m) * m


def ucm_decoder_forward(input_features, intrinsic_vector):
    """JAX/Pallas equivalent of UCMDecoder.forward.

    input_features: list of arrays; only the last one's batch dim is used.
    intrinsic_vector: (5,) float32 parameter (init: -ones(5)).
    Returns: (B, 5) float32 intrinsics repeated over batch.
    """
    x = input_features[-1]
    B = x.shape[0]

    # Scalar math in the wrapper (5 values; fusable XLA ops, not kernel work).
    iv = intrinsic_vector.astype(jnp.float32).reshape(_NUM_INTRINSICS)
    scale = jnp.array([1000.0, 1000.0, 1000.0, 1000.0, 1.0], dtype=jnp.float32)
    row = (jax.nn.sigmoid(iv) * scale).reshape(1, _NUM_INTRINSICS)  # (1, 5)

    # Batch tiling:
    #  * B <= 8: single block whose sublane dim equals the full array dim
    #    (satisfies the (8,128)-or-full-dim rule exactly, grid of 1).
    #  * B  > 8: blocks are multiples of 8 sublanes, capped at _TILE_CAP, and
    #    sized to give >= 2 grid steps so the "parallel" axis can shard across
    #    v7x's two TensorCores.  Ragged last block is masked by Pallas.
    if B <= 8:
        tile_b = B
    else:
        tile_b = min(_round_up(pl.cdiv(B, 2), 8), _TILE_CAP)
    grid = (pl.cdiv(B, tile_b),)

    out = pl.pallas_call(
        _broadcast_row_kernel,
        out_shape=jax.ShapeDtypeStruct((B, _NUM_INTRINSICS), jnp.float32),
        grid=grid,
        in_specs=[pl.BlockSpec((1, _NUM_INTRINSICS), lambda i: (0, 0))],
        out_specs=pl.BlockSpec((tile_b, _NUM_INTRINSICS), lambda i: (i, 0)),
        compiler_params=pltpu.CompilerParams(
            dimension_semantics=("parallel",)),
    )(row)

    return out


if __name__ == "__main__":
    key = jax.random.PRNGKey(0)

    # Deterministic parameter init, matching nn.Parameter(-torch.ones(5)).
    intrinsic_vector = -jnp.ones((_NUM_INTRINSICS,), dtype=jnp.float32)

    # Small synthetic encoder features (NCHW); only the batch dim of the
    # last feature is actually consumed.
    k1, k2 = jax.random.split(key)
    feat0 = jax.random.normal(k1, (2, 4, 32, 32), dtype=jnp.float32)
    feat1 = jax.random.normal(k2, (2, 4, 16, 16), dtype=jnp.float32)
    input_features = [feat0, feat1]

    out = ucm_decoder_forward(input_features, intrinsic_vector)
    out = jax.block_until_ready(out)

    # Reference check (plain JAX) of the forward semantics.
    s = jax.nn.sigmoid(intrinsic_vector)
    ref_row = jnp.concatenate([s[0:4] * 1000.0, s[4:5] * 1.0])
    ref = jnp.broadcast_to(ref_row[None, :], (2, _NUM_INTRINSICS))
    assert out.shape == (2, _NUM_INTRINSICS) and out.dtype == jnp.float32
    assert jnp.allclose(out, ref, rtol=1e-6, atol=1e-6)

    print("KERNEL_OK")
</pallas_src>

<mosaic_0001>
module attributes {stable_mosaic.version = 11 : i64} {
  func.func @_broadcast_row_kernel(%arg0: i32, %arg1: memref<1x5xf32, #tpu.memory_space<vmem>>, %arg2: memref<2x5xf32, #tpu.memory_space<vmem>>) attributes {dimension_semantics = [#tpu.dimension_semantics<parallel>], iteration_bounds = array<i64: 1>, scalar_prefetch = 0 : i64, scratch_operands = 0 : i64, tpu.core_type = #tpu.core_type<tc>, window_params = [{pipeline_mode = #tpu.pipeline_mode<synchronous>, transform_indices = @transform_0, window_bounds = array<i64: 1, 5>}, {transform_indices = @transform_1, window_bounds = array<i64: 2, 5>}]} {
    %c0 = arith.constant 0 : index
    %c0_0 = arith.constant 0 : index
    %0 = vector.load %arg1[%c0, %c0_0] : memref<1x5xf32, #tpu.memory_space<vmem>>, vector<1x5xf32>
    %1 = vector.shape_cast %0 : vector<1x5xf32> to vector<1x5xf32>
    %2 = vector.broadcast %1 : vector<1x5xf32> to vector<2x5xf32>
    %c0_1 = arith.constant 0 : index
    %c0_2 = arith.constant 0 : index
    %3 = vector.load %arg2[%c0_1, %c0_2] : memref<2x5xf32, #tpu.memory_space<vmem>>, vector<2x5xf32>
    tpu.vector_store %arg2[%c0_1, %c0_2], %2 {strides = array<i32>} : memref<2x5xf32, #tpu.memory_space<vmem>>, vector<2x5xf32>,
    return
  }
  func.func @transform_0(%arg0: i32) -> (i32, i32) {
    %c0_i32 = arith.constant 0 : i32
    %c0_i32_0 = arith.constant 0 : i32
    %c0_i32_1 = arith.constant 0 : i32
    return %c0_i32, %c0_i32_0 : i32, i32
  }
  func.func @transform_1(%arg0: i32) -> (i32, i32) {
    %c0_i32 = arith.constant 0 : i32
    %c0_i32_0 = arith.constant 0 : i32
    return %arg0, %c0_i32 : i32, i32
  }
}

</mosaic_0001>

<llo_original>
// kernel: tpu_custom_call.1
$region0: #{tpu_custom_call.1}
  #allocation0 [shape = 'u32[]', space=smem, size = 0x4, offset = 0x4, fixed_abs, tag = 'smem constant byte address 0x4 - core index']
  #allocation1 [shape = 'u32[144,128]{1,0:T(1,128)}', space=vmem, size = 0x12000, scoped, tag = 'internal scratch']
  %s0 = inlined_call_operand.hbm [shape: f32[1,5], index: 0, kind: input, shape index: {}]
  %s1 = inlined_call_operand.hbm [shape: f32[2,5], index: 1, kind: output, shape index: {}]
  %s2 = sld [smem:[#allocation0]]
  $region18: #{tpu_custom_call.1} parent=0
    _
  %s4 = ssub.s32 1, %s2
  %s5 = scalar_select 0, %s4, %s2
  $region1: #{tpu_custom_call.1} parent=0
    #allocation2 [shape = 'u8[512]{0}', space=vmem, size = 0x400, scoped, tag = 'input window, operand 0, single buffered']
    #allocation3 [shape = 's32[1]{0}', space=sflag, size = 0x4, scoped, tag = 'scoped memory for tpu_custom_call.1']
    #allocation4 [shape = 's32[1]{0}', space=sflag, size = 0x4, scoped, tag = 'scoped memory for tpu_custom_call.1']
    #allocation5 [shape = 'u8[1024]{0}', space=vmem, size = 0x400, scoped, tag = 'output window, operand 0, single buffered']
    %6 = vsyncpa [#allocation3], 0
    %7 = vsyncpa [#allocation4], 0
    // Predicated region
    $region2: #{tpu_custom_call.1} parent=1 // pred_check
      _
    $region3: #{tpu_custom_call.1} parent=1 // pred_check_branch
      %9 = sbr.rel (0) target = $region5
    $region4: #{tpu_custom_call.1} parent=1 // pred_region
      %s11 = ssub.s32 16, 16
      %12 = vsyncadd [#allocation3], %s11
      %s14 = sshll.u32 [#allocation2], 4
      %s15 = int_to_ptr.vmem [resolvable:$true] %s14
      %17 = dma.hbm_to_vmem [thread:$0]  %s0, 16, %s15, [#allocation3]
    $region5: #{tpu_custom_call.1} parent=1 // pred_fallthru
      _
    // Predicated region
    $region6: #{tpu_custom_call.1} parent=1 // pred_check
      _
    $region7: #{tpu_custom_call.1} parent=1 // pred_check_branch
      %19 = sbr.rel (0) target = $region9
    $region8: #{tpu_custom_call.1} parent=1 // pred_region
      %20 = dma.done [#allocation3], 16
    $region9: #{tpu_custom_call.1} parent=1 // pred_fallthru
      _
    %v21 = vld [vmem:[#allocation2] sm:$0x1]
    %v23 = vlaneseq
    %v24 = vshrl.u32 %v23, 7
    %v25 = vsub.s32 0, %v24
    %v26 = vrot.slane %v21, %v25
    %vm28 = vcmask 33792
    %29 = vst.msk [vmem:[#allocation5] sm:$0x3] %vm28, %v26
    // Predicated region
    $region10: #{tpu_custom_call.1} parent=1 // pred_check
      _
    $region11: #{tpu_custom_call.1} parent=1 // pred_check_branch
      %31 = sbr.rel (0) target = $region13
    $region12: #{tpu_custom_call.1} parent=1 // pred_region
      %s33 = ssub.s32 32, 32
      %34 = vsyncadd [#allocation4], %s33
      %s36 = sshll.u32 [#allocation5], 4
      %s37 = int_to_ptr.vmem [resolvable:$true] %s36
      %39 = dma.vmem_to_hbm [thread:$0]  %s37, 32, %s1, [#allocation4]
    $region13: #{tpu_custom_call.1} parent=1 // pred_fallthru
      _
    // Predicated region
    $region14: #{tpu_custom_call.1} parent=1 // pred_check
      _
    $region15: #{tpu_custom_call.1} parent=1 // pred_check_branch
      %41 = sbr.rel (0) target = $region17
    $region16: #{tpu_custom_call.1} parent=1 // pred_region
      %42 = dma.done [#allocation4], 32
    $region17: #{tpu_custom_call.1} parent=1 // pred_fallthru
      _
    %43 = vsyncpa [#allocation3], 1
    %44 = vsyncpa [#allocation4], 1

</llo_original>
